<compile_context>
chip_gen: v6e
topology: v6e:2x2x1
jax: 0.10.0
libtpu: 0.0.40
codegen_flags: <defaults>
</compile_context>

<pallas_src>
import jax
import jax.numpy as jnp
from jax.experimental import pallas as pl
from jax.experimental.pallas import tpu as pltpu


def _patch_embed_kernel(patches_ref, w_ref, pos0_ref, pos_ref, out_ref):
    """One grid step handles one (batch-group, row-tile).

    patches_ref : (bB, tm, P)  bf16  flattened patches for this tile
    w_ref       : (P, E)       bf16  projection weight (in_dim x out_dim), grid-constant
    pos0_ref    : (1, E)       f32   class_token + pos_embedding[0]        (precomputed)
    pos_ref     : (N, E)       f32   pos_embedding[1:] + bias, grid-constant (DMA'd once)
    out_ref     : (bB, S, E)         full output sequences for this batch group (resident
                                     across the row-tile grid axis)
    """
    t = pl.program_id(1)
    bB = patches_ref.shape[0]
    tm = patches_ref.shape[1]

    start = t * tm
    if tm % 8 == 0:
        start = pl.multiple_of(start, 8)
    # Slice the resident position table (no per-batch HBM re-read).
    pos_tile = pos_ref[pl.ds(start, tm), :]                       # (tm, E) f32

    # Class-token row: batch-invariant constant, written once per batch element.
    @pl.when(t == 0)
    def _():
        for bb in range(bB):
            out_ref[bb, 0:1, :] = pos0_ref[...].astype(out_ref.dtype)

    # MXU matmuls: bf16 operands, f32 accumulation; one 2-D dot per folded batch element
    # (static unroll, avoids any in-kernel relayouting reshape).
    for bb in range(bB):
        emb = jnp.dot(patches_ref[bb], w_ref[...],
                      preferred_element_type=jnp.float32)         # (tm, E) f32
        # Epilogue: single f32 add (bias already folded into the pos table), store patch rows.
        out_ref[bb, pl.ds(1 + start, tm), :] = (emb + pos_tile).astype(out_ref.dtype)


def _pick_row_tile(n_patches, cap=512):
    """Row tile for the GEMM M dimension when N must be tiled.

    Prefer MXU-shaped divisors of N (multiples of 256, then 128, then 8); fall back to N.
    """
    n = n_patches
    if n <= cap:
        return n
    for align in (256, 128, 8):
        tm = cap - cap % align
        while tm >= align:
            if n % tm == 0:
                return tm
            tm -= align
    # TODO(synk): awkward N (> cap with no multiple-of-8 divisor) falls back to the full row
    # count; a pl.cdiv grid with a masked last tile would bound VMEM but needs careful OOB
    # handling against the resident output block.
    return n


def _pick_batch_block(batch, n_patches, row_cap=512):
    """Batch elements folded into one grid step (GEMM M = bB * N) when N is small."""
    if n_patches >= row_cap or batch <= 1:
        return 1
    # Keep at least two batch groups so v7x's 2 TensorCores / megacore sharding have extent.
    bb = min(max(1, row_cap // n_patches), max(1, batch // 2))
    while batch % bb != 0:
        bb -= 1
    return max(bb, 1)


def _vmem_limit_bytes(bB, tm, P, E, N, S):
    """Scoped-VMEM request derived from the actual buffer footprint, capped below physical."""
    need = (
        2 * bB * tm * P * 2      # patch tile (bf16), double-buffered
        + 2 * P * E * 2          # weight (bf16), grid-constant (2 buffers reserved by default)
        + 2 * 1 * E * 4          # class row (cls + pos[0]), f32
        + 2 * N * E * 4          # full position table (f32), grid-constant, resident
        + 2 * bB * S * E * 4     # resident output block, double-buffered across the batch axis
    )
    try:
        physical = pltpu.get_tpu_info().vmem_capacity_bytes
    except Exception:
        physical = 64 << 20      # assume the smallest per-TC VMEM (v7x) if the query fails
    ceiling = (physical * 3) // 4            # headroom for Mosaic internal scratch/semaphores
    return int(min(max(need * 5 // 4 + (2 << 20), 16 << 20), ceiling))


def patch_position_embedding(x, weight, bias, class_token, pos_embedding, patch_d,
                             *, row_tile_cap=512, out_dtype=jnp.float32):
    """JAX wrapper. x: (B, C, H, W) float32. Returns (B, N+1, E) in out_dtype (default f32)."""
    B, C, H, W = x.shape
    p = patch_d
    assert H % p == 0 and W % p == 0
    n_h, n_w = H // p, W // p
    N = n_h * n_w
    P = p * p * C
    E = weight.shape[0]                      # torch Linear weight is (out, in)
    S = N + 1

    # --- patch extraction: single XLA transpose in bf16 (cast fuses in, halves that round
    #     trip). Flatten order (C, ph, pw) matches the torch reshape. ---
    xb = x.astype(jnp.bfloat16)
    patches = xb.reshape(B, C, n_h, p, n_w, p)                   # free bitcast
    patches = patches.transpose(0, 2, 4, 1, 3, 5)                # (B, nh, nw, C, p, p)
    patches = patches.reshape(B, N, P)                           # (B, N, C*p*p) bf16

    # --- constant prep (one-time, tiny): fold bias + class token into the position tables.
    #     Kept f32; for very large N*E this could be bf16 to halve its VMEM residency. ---
    w_t = weight.T.astype(jnp.bfloat16)                                          # (P, E)
    pos0 = (pos_embedding[0:1] + class_token.reshape(1, E)).astype(jnp.float32)  # (1, E)
    pos_rest = (pos_embedding[1:] + bias.reshape(1, E)).astype(jnp.float32)      # (N, E)

    tm = _pick_row_tile(N, row_tile_cap)
    T = N // tm
    bB = _pick_batch_block(B, N, row_tile_cap) if tm == N else 1

    grid_spec = pltpu.PrefetchScalarGridSpec(
        num_scalar_prefetch=0,
        grid=(B // bB, T),
        in_specs=[
            pl.BlockSpec((bB, tm, P), lambda g, t: (g, t, 0)),   # patch row tile (batch group)
            pl.BlockSpec((P, E), lambda g, t: (0, 0)),           # weight (grid-constant)
            pl.BlockSpec((1, E), lambda g, t: (0, 0)),           # cls + pos[0] (grid-constant)
            pl.BlockSpec((N, E), lambda g, t: (0, 0)),           # pos[1:]+bias (grid-constant,
                                                                 #   DMA'd once, sliced in-kernel)
        ],
        # Full (bB, S, E) block per batch group, resident across the row-tile axis; rows are
        # written in place (no in-kernel concatenate).
        out_specs=pl.BlockSpec((bB, S, E), lambda g, t: (g, 0, 0)),
    )

    return pl.pallas_call(
        _patch_embed_kernel,
        out_shape=jax.ShapeDtypeStruct((B, S, E), out_dtype),
        grid_spec=grid_spec,
        compiler_params=pltpu.CompilerParams(
            dimension_semantics=("parallel", "arbitrary"),
            vmem_limit_bytes=_vmem_limit_bytes(bB, tm, P, E, N, S),
        ),
    )(patches, w_t, pos0, pos_rest)


def _reference(x, weight, bias, class_token, pos_embedding, patch_d):
    """Pure-JAX f32 reference mirroring the PyTorch forward (eval mode)."""
    B, C, H, W = x.shape
    p = patch_d
    n_h, n_w = H // p, W // p
    N = n_h * n_w
    P = p * p * C
    patches = x.reshape(B, C, n_h, p, n_w, p).transpose(0, 2, 4, 1, 3, 5).reshape(B, N, P)
    vec = patches @ weight.T + bias                              # (B, N, E)
    cls = jnp.broadcast_to(class_token.reshape(1, 1, -1), (B, 1, weight.shape[0]))
    emb = jnp.concatenate([cls, vec], axis=1)                    # (B, N+1, E)
    return emb + pos_embedding[None, :, :]


if __name__ == "__main__":
    # Small shapes consistent with the module's forward:
    # image_h = image_w = 16, image_c = 4, patch_d = 4, embedding_dim = 32, batch = 2.
    B, C, H, W = 2, 4, 16, 16
    patch_d = 4
    E = 32
    N = (H // patch_d) * (W // patch_d)        # 16
    S = N + 1                                  # 17
    P = patch_d * patch_d * C                  # 64

    key = jax.random.PRNGKey(0)
    k_x, k_w, k_b, k_cls, k_pos = jax.random.split(key, 5)

    x = jax.random.normal(k_x, (B, C, H, W), dtype=jnp.float32)
    # Deterministic synthetic parameters (shapes follow nn.Linear / nn.Embedding / class_token).
    weight = jax.random.normal(k_w, (E, P), dtype=jnp.float32) * 0.05   # Linear weight (out, in)
    bias = jax.random.normal(k_b, (E,), dtype=jnp.float32) * 0.05       # Linear bias
    class_token = jax.random.normal(k_cls, (E,), dtype=jnp.float32)     # (1,1,E) squeezed
    pos_embedding = jax.random.normal(k_pos, (S, E), dtype=jnp.float32) # Embedding table

    out = patch_position_embedding(x, weight, bias, class_token, pos_embedding, patch_d)
    out = jax.block_until_ready(out)

    ref = _reference(x, weight, bias, class_token, pos_embedding, patch_d)
    assert out.shape == (B, S, E), out.shape
    # bf16 matmul operands (f32 accumulation) -> compare against the f32 reference with a
    # correspondingly looser tolerance.
    assert jnp.allclose(out, ref, atol=2e-2, rtol=2e-2), "mismatch vs pure-JAX reference"

    print("KERNEL_OK")
</pallas_src>

<mosaic_0001>
module attributes {stable_mosaic.version = 11 : i64} {
  func.func @_patch_embed_kernel(%arg0: i32, %arg1: i32, %arg2: memref<1x16x64xbf16, #tpu.memory_space<vmem>>, %arg3: memref<64x32xbf16, #tpu.memory_space<vmem>>, %arg4: memref<1x32xf32, #tpu.memory_space<vmem>>, %arg5: memref<16x32xf32, #tpu.memory_space<vmem>>, %arg6: memref<1x17x32xf32, #tpu.memory_space<vmem>>) attributes {dimension_semantics = [#tpu.dimension_semantics<parallel>, #tpu.dimension_semantics<arbitrary>], iteration_bounds = array<i64: 2, 1>, scalar_prefetch = 0 : i64, scratch_operands = 0 : i64, tpu.core_type = #tpu.core_type<tc>, window_params = [{transform_indices = @transform_0, window_bounds = array<i64: 1, 16, 64>}, {pipeline_mode = #tpu.pipeline_mode<synchronous>, transform_indices = @transform_1, window_bounds = array<i64: 64, 32>}, {pipeline_mode = #tpu.pipeline_mode<synchronous>, transform_indices = @transform_2, window_bounds = array<i64: 1, 32>}, {pipeline_mode = #tpu.pipeline_mode<synchronous>, transform_indices = @transform_3, window_bounds = array<i64: 16, 32>}, {transform_indices = @transform_4, window_bounds = array<i64: 1, 17, 32>}]} {
    %c16_i32 = arith.constant 16 : i32
    %0 = arith.muli %arg1, %c16_i32 : i32
    %1 = tpu.assume_multiple %0, 8 : i32
    %2 = arith.index_cast %1 : i32 to index
    %c0 = arith.constant 0 : index
    %3 = vector.load %arg5[%2, %c0] : memref<16x32xf32, #tpu.memory_space<vmem>>, vector<16x32xf32>
    %c0_i32 = arith.constant 0 : i32
    %4 = arith.cmpi eq, %arg1, %c0_i32 : i32
    %5 = arith.extui %4 : i1 to i32
    %c0_i32_0 = arith.constant 0 : i32
    %6 = arith.cmpi ne, %5, %c0_i32_0 : i32
    scf.if %6 {
      %c0_8 = arith.constant 0 : index
      %c0_9 = arith.constant 0 : index
      %17 = vector.load %arg4[%c0_8, %c0_9] : memref<1x32xf32, #tpu.memory_space<vmem>>, vector<1x32xf32>
      %c0_10 = arith.constant 0 : index
      %c0_11 = arith.constant 0 : index
      %c0_12 = arith.constant 0 : index
      %18 = vector.load %arg6[%c0_10, %c0_11, %c0_12] : memref<1x17x32xf32, #tpu.memory_space<vmem>>, vector<1x1x32xf32>
      %19 = vector.shape_cast %18 : vector<1x1x32xf32> to vector<1x32xf32>
      %20 = vector.shape_cast %17 : vector<1x32xf32> to vector<1x1x32xf32>
      tpu.vector_store %arg6[%c0_10, %c0_11, %c0_12], %20 {strides = array<i32>} : memref<1x17x32xf32, #tpu.memory_space<vmem>>, vector<1x1x32xf32>,
    } else {
    }
    %c0_1 = arith.constant 0 : index
    %c0_2 = arith.constant 0 : index
    %c0_3 = arith.constant 0 : index
    %7 = vector.load %arg2[%c0_1, %c0_2, %c0_3] : memref<1x16x64xbf16, #tpu.memory_space<vmem>>, vector<1x16x64xbf16>
    %8 = vector.shape_cast %7 : vector<1x16x64xbf16> to vector<16x64xbf16>
    %c0_4 = arith.constant 0 : index
    %c0_5 = arith.constant 0 : index
    %9 = vector.load %arg3[%c0_4, %c0_5] : memref<64x32xbf16, #tpu.memory_space<vmem>>, vector<64x32xbf16>
    %cst = arith.constant dense<0.000000e+00> : vector<16x32xf32>
    %10 = tpu.matmul %8, %9, %cst {dimension_numbers = #tpu.dot_dimension_numbers<[1], [0], [0], [1], [0, 0, 1, 1], [], []>} : vector<16x64xbf16>, vector<64x32xbf16>, vector<16x32xf32> -> vector<16x32xf32>
    %11 = arith.addf %10, %3 : vector<16x32xf32>
    %c1_i32 = arith.constant 1 : i32
    %12 = arith.addi %c1_i32, %1 : i32
    %c0_6 = arith.constant 0 : index
    %13 = arith.index_cast %12 : i32 to index
    %c0_7 = arith.constant 0 : index
    %14 = vector.load %arg6[%c0_6, %13, %c0_7] : memref<1x17x32xf32, #tpu.memory_space<vmem>>, vector<1x16x32xf32>
    %15 = vector.shape_cast %14 : vector<1x16x32xf32> to vector<16x32xf32>
    %16 = vector.shape_cast %11 : vector<16x32xf32> to vector<1x16x32xf32>
    tpu.vector_store %arg6[%c0_6, %13, %c0_7], %16 {strides = array<i32>} : memref<1x17x32xf32, #tpu.memory_space<vmem>>, vector<1x16x32xf32>,
    return
  }
  func.func @transform_0(%arg0: i32, %arg1: i32) -> (i32, i32, i32) {
    %c0_i32 = arith.constant 0 : i32
    %c0_i32_0 = arith.constant 0 : i32
    return %arg0, %arg1, %c0_i32 : i32, i32, i32
  }
  func.func @transform_1(%arg0: i32, %arg1: i32) -> (i32, i32) {
    %c0_i32 = arith.constant 0 : i32
    %c0_i32_0 = arith.constant 0 : i32
    %c0_i32_1 = arith.constant 0 : i32
    return %c0_i32, %c0_i32_0 : i32, i32
  }
  func.func @transform_2(%arg0: i32, %arg1: i32) -> (i32, i32) {
    %c0_i32 = arith.constant 0 : i32
    %c0_i32_0 = arith.constant 0 : i32
    %c0_i32_1 = arith.constant 0 : i32
    return %c0_i32, %c0_i32_0 : i32, i32
  }
  func.func @transform_3(%arg0: i32, %arg1: i32) -> (i32, i32) {
    %c0_i32 = arith.constant 0 : i32
    %c0_i32_0 = arith.constant 0 : i32
    %c0_i32_1 = arith.constant 0 : i32
    return %c0_i32, %c0_i32_0 : i32, i32
  }
  func.func @transform_4(%arg0: i32, %arg1: i32) -> (i32, i32, i32) {
    %c0_i32 = arith.constant 0 : i32
    %c0_i32_0 = arith.constant 0 : i32
    %c0_i32_1 = arith.constant 0 : i32
    return %arg0, %c0_i32, %c0_i32_0 : i32, i32, i32
  }
}

</mosaic_0001>

<llo_original>
// kernel: tpu_custom_call.1
$region0: #{tpu_custom_call.1}
  #allocation0 [shape = 'u32[]', space=smem, size = 0x4, offset = 0x4, fixed_abs, tag = 'smem constant byte address 0x4 - core index']
  #allocation1 [shape = 'u32[144,128]{1,0:T(1,128)}', space=vmem, size = 0x12000, scoped, tag = 'internal scratch']
  %s0 = inlined_call_operand.vmem [shape: bf16[2,16,64], index: 0, kind: input, shape index: {}]
  %s1 = inlined_call_operand.vmem [shape: bf16[64,32], index: 1, kind: input, shape index: {}]
  %s2 = inlined_call_operand.vmem [shape: f32[1,32], index: 2, kind: input, shape index: {}]
  %s3 = inlined_call_operand.vmem [shape: f32[16,32], index: 3, kind: input, shape index: {}]
  %s4 = inlined_call_operand.vmem [shape: f32[2,17,32], index: 4, kind: output, shape index: {}]
  %s5 = sld [smem:[#allocation0]]
  $region53: #{tpu_custom_call.1} parent=0
    _
  %s7 = ssub.s32 1, %s5
  %s8 = scalar_select 0, %s7, %s5
  loop: start=0, step=1, limit=4
  $region2: #{tpu_custom_call.1} parent=0 // loop_pre_header
    _
  $region3: #{tpu_custom_call.1} parent=0 // loop_header
    %s10 = sphi 0, %s14
    %p11 = scmp.ge.s32.totalorder %s10, 4
    %s17 = sphi 0, %s29
    %s18 = sphi 0, %s25
    %s19 = sphi 0, %s17
    %s20 = sphi 0, %s18
    %s21 = sphi 0, %s19
    %s22 = sphi 0, %s20
    %s34 = sphi 0, %s36
    %s37 = sphi 0, %s34
    %s38 = sphi 0, %s37
    %s54 = sphi 0, %s38
    %s58 = sphi 0, %s58
    %s60 = sphi 0, %s58
    %s61 = sphi 0, %s60
    %s75 = sphi 0, %s61
    %s79 = sphi 0, %s79
    %s81 = sphi 0, %s79
    %s82 = sphi 0, %s81
    %s96 = sphi 0, %s82
    %s100 = sphi 0, %s100
    %s102 = sphi 0, %s100
    %s103 = sphi 0, %s102
    %s117 = sphi 0, %s103
    %s123 = sphi 0, %s125
    %s126 = sphi 0, %s123
    %s127 = sphi 0, %s126
    %s143 = sphi 0, %s127
  $region4: #{tpu_custom_call.1} parent=0 // loop_header_branch
    %13 = sbr.rel (%p11) target = $region8
  $region5: #{tpu_custom_call.1} parent=0 // loop_body
    %s15 = ssub.s32 %s10, 1
    %s16 = ssub.s32 %s10, 2
    %s23 = sadd.s32 1, %s18
    %p24 = scmp.ge.s32.totalorder %s23, 1
    %s25 = scalar_select %p24, 0, %s23
    %s26 = sadd.s32 1, %s17
    %s27 = scalar_select %p24, %s26, %s17
    %p28 = scmp.ge.s32.totalorder %s27, 2
    %s29 = scalar_select %p28, 0, %s27
    %s30 = ssub.s32 %s17, %s29
    %s31 = ssub.s32 %s18, %s25
    %s32 = sor.u32 %s30, %s31
    %p33 = scmp.eq.s32.totalorder %s32, 0
    %s35 = sadd.s32 %s34, 1
    %s36 = scalar_select %p33, %s34, %s35
    %p39 = pneg %p33
    %p40 = scmp.eq.s32.totalorder %s10, 1
    %p41 = por %p39, %p40
    %p42 = scmp.ne.s32.totalorder %s34, %s37
    %p43 = scmp.eq.s32.totalorder %s10, 0
    %p44 = por %p42, %p43
    %p45 = scmp.ne.s32.totalorder %s34, %s37
    %p46 = scmp.eq.s32.totalorder %s15, 1
    %p47 = por %p45, %p46
    %p48 = scmp.ne.s32.totalorder %s37, %s38
    %p49 = scmp.eq.s32.totalorder %s15, 0
    %p50 = por %p48, %p49
    %p51 = scmp.ne.s32.totalorder %s37, %s38
    %p52 = scmp.eq.s32.totalorder %s16, 1
    %p53 = por %p51, %p52
    %p55 = scmp.ne.s32.totalorder %s38, %s54
    %p56 = scmp.eq.s32.totalorder %s16, 0
    %p57 = por %p55, %p56
    %s59 = sadd.s32 %s58, 1
    %p62 = scmp.eq.s32.totalorder %s10, 1
    %p63 = scmp.ne.s32.totalorder %s58, %s60
    %p64 = scmp.eq.s32.totalorder %s10, 0
    %p65 = por %p63, %p64
    %p66 = scmp.ne.s32.totalorder %s58, %s60
    %p67 = scmp.eq.s32.totalorder %s15, 1
    %p68 = por %p66, %p67
    %p69 = scmp.ne.s32.totalorder %s60, %s61
    %p70 = scmp.eq.s32.totalorder %s15, 0
    %p71 = por %p69, %p70
    %p72 = scmp.ne.s32.totalorder %s60, %s61
    %p73 = scmp.eq.s32.totalorder %s16, 1
    %p74 = por %p72, %p73
    %p76 = scmp.ne.s32.totalorder %s61, %s75
    %p77 = scmp.eq.s32.totalorder %s16, 0
    %p78 = por %p76, %p77
    %s80 = sadd.s32 %s79, 1
    %p83 = scmp.eq.s32.totalorder %s10, 1
    %p84 = scmp.ne.s32.totalorder %s79, %s81
    %p85 = scmp.eq.s32.totalorder %s10, 0
    %p86 = por %p84, %p85
    %p87 = scmp.ne.s32.totalorder %s79, %s81
    %p88 = scmp.eq.s32.totalorder %s15, 1
    %p89 = por %p87, %p88
    %p90 = scmp.ne.s32.totalorder %s81, %s82
    %p91 = scmp.eq.s32.totalorder %s15, 0
    %p92 = por %p90, %p91
    %p93 = scmp.ne.s32.totalorder %s81, %s82
    %p94 = scmp.eq.s32.totalorder %s16, 1
    %p95 = por %p93, %p94
    %p97 = scmp.ne.s32.totalorder %s82, %s96
    %p98 = scmp.eq.s32.totalorder %s16, 0
    %p99 = por %p97, %p98
    %s101 = sadd.s32 %s100, 1
    %p104 = scmp.eq.s32.totalorder %s10, 1
    %p105 = scmp.ne.s32.totalorder %s100, %s102
    %p106 = scmp.eq.s32.totalorder %s10, 0
    %p107 = por %p105, %p106
    %p108 = scmp.ne.s32.totalorder %s100, %s102
    %p109 = scmp.eq.s32.totalorder %s15, 1
    %p110 = por %p108, %p109
    %p111 = scmp.ne.s32.totalorder %s102, %s103
    %p112 = scmp.eq.s32.totalorder %s15, 0
    %p113 = por %p111, %p112
    %p114 = scmp.ne.s32.totalorder %s102, %s103
    %p115 = scmp.eq.s32.totalorder %s16, 1
    %p116 = por %p114, %p115
    %p118 = scmp.ne.s32.totalorder %s103, %s117
    %p119 = scmp.eq.s32.totalorder %s16, 0
    %p120 = por %p118, %p119
    %s121 = ssub.s32 %s17, %s29
    %p122 = scmp.eq.s32.totalorder %s121, 0
    %s124 = sadd.s32 %s123, 1
    %s125 = scalar_select %p122, %s123, %s124
    %p128 = pneg %p122
    %p129 = scmp.eq.s32.totalorder %s10, 1
    %p130 = por %p128, %p129
    %p131 = scmp.ne.s32.totalorder %s123, %s126
    %p132 = scmp.eq.s32.totalorder %s10, 0
    %p133 = por %p131, %p132
    %p134 = scmp.ne.s32.totalorder %s123, %s126
    %p135 = scmp.eq.s32.totalorder %s15, 1
    %p136 = por %p134, %p135
    %p137 = scmp.ne.s32.totalorder %s126, %s127
    %p138 = scmp.eq.s32.totalorder %s15, 0
    %p139 = por %p137, %p138
    %p140 = scmp.ne.s32.totalorder %s126, %s127
    %p141 = scmp.eq.s32.totalorder %s16, 1
    %p142 = por %p140, %p141
    %p144 = scmp.ne.s32.totalorder %s127, %s143
    %p145 = scmp.eq.s32.totalorder %s16, 0
    %p146 = por %p144, %p145
    %p147 = scmp.le.s32.totalorder 1, %s10
    %p148 = scmp.lt.s32.totalorder %s10, 3
    %p149 = pnand %p147, %p148
    %p150 = pneg %p149
    // Predicated region
    $region9: #{tpu_custom_call.1} parent=5 // pred_check
      _
    $region10: #{tpu_custom_call.1} parent=5 // pred_check_branch
      %152 = sbr.rel (%p149) target = $region12
    $region11: #{tpu_custom_call.1} parent=5 // pred_region
      %s153 = ssub.s32 %s10, 1
      // Predicated region
      $region13: #{tpu_custom_call.1} parent=11 // pred_check
        %p154 = pneg %p71
      $region14: #{tpu_custom_call.1} parent=11 // pred_check_branch
        %156 = sbr.rel (%p154) target = $region16
      $region15: #{tpu_custom_call.1} parent=11 // pred_region
        _
      $region16: #{tpu_custom_call.1} parent=11 // pred_fallthru
        _
      // Predicated region
      $region17: #{tpu_custom_call.1} parent=11 // pred_check
        %p157 = pneg %p92
      $region18: #{tpu_custom_call.1} parent=11 // pred_check_branch
        %159 = sbr.rel (%p157) target = $region20
      $region19: #{tpu_custom_call.1} parent=11 // pred_region
        _
      $region20: #{tpu_custom_call.1} parent=11 // pred_fallthru
        _
      // Predicated region
      $region21: #{tpu_custom_call.1} parent=11 // pred_check
        %p160 = pneg %p113
      $region22: #{tpu_custom_call.1} parent=11 // pred_check_branch
        %162 = sbr.rel (%p160) target = $region24
      $region23: #{tpu_custom_call.1} parent=11 // pred_region
        _
      $region24: #{tpu_custom_call.1} parent=11 // pred_fallthru
        _
    $region12: #{tpu_custom_call.1} parent=5 // pred_fallthru
      _
    %p163 = scmp.lt.s32.totalorder %s10, 2
    // Predicated region
    $region25: #{tpu_custom_call.1} parent=5 // pred_check
      %p164 = pneg %p163
    $region26: #{tpu_custom_call.1} parent=5 // pred_check_branch
      %166 = sbr.rel (%p164) target = $region28
    $region27: #{tpu_custom_call.1} parent=5 // pred_region
      // Predicated region
      $region29: #{tpu_custom_call.1} parent=27 // pred_check
        %p167 = pneg %p44
      $region30: #{tpu_custom_call.1} parent=27 // pred_check_branch
        %169 = sbr.rel (%p167) target = $region32
      $region31: #{tpu_custom_call.1} parent=27 // pred_region
        %s170 = smul.u32 2, %s18
        %p171 = scmp.lt.s32.totalorder %s17, 1
        %s172 = scalar_select %p171, %s17, 1
        %p173 = scmp.lt.s32.totalorder %s170, 1
        %s174 = scalar_select %p173, %s170, 1
        %s175 = smul.addr %s172, 2
        %s176 = sadd.s32 %s174, %s175
        %s177 = smul.addr %s176, 4
        %s178 = scalar_lea.vmem %s0, %s177
        %s179 = smul.u32 2, %s18
      $region32: #{tpu_custom_call.1} parent=27 // pred_fallthru
        _
    $region28: #{tpu_custom_call.1} parent=5 // pred_fallthru
      _
    %p180 = scmp.le.s32.totalorder 1, %s10
    %p181 = scmp.lt.s32.totalorder %s10, 3
    %p182 = pnand %p180, %p181
    %p183 = pneg %p182
    // Predicated region
    $region33: #{tpu_custom_call.1} parent=5 // pred_check
      _
    $region34: #{tpu_custom_call.1} parent=5 // pred_check_branch
      %185 = sbr.rel (%p182) target = $region36
    $region35: #{tpu_custom_call.1} parent=5 // pred_region
      %s186 = ssub.s32 %s10, 1
      %s187 = smul.u32 2, %s20
      %p188 = scmp.lt.s32.totalorder %s19, 1
      %s189 = scalar_select %p188, %s19, 1
      %p190 = scmp.lt.s32.totalorder %s187, 1
      %s191 = scalar_select %p190, %s187, 1
      %s192 = smul.addr %s189, 2
      %s193 = sadd.s32 %s191, %s192
      %s194 = smul.addr %s193, 4
      %s195 = scalar_lea.vmem %s0, %s194
      %p196 = pneg %p50
      %p197 = pneg %p47
      %p198 = pneg %p71
      %p199 = pneg %p68
      %p200 = pneg %p92
      %p201 = pneg %p89
      %p202 = pneg %p113
      %p203 = pneg %p110
      %p204 = pneg %p139
      %p205 = pneg %p136
      %p206 = scmp.lt.s32.totalorder %s19, 1
      %s207 = scalar_select %p206, %s19, 1
      %s208 = smul.addr %s207, 3
      %s209 = smul.addr %s208, 8
      %s210 = scalar_lea.vmem %s4, %s209
      %s211 = smul.u32 2, %s20
      %p212 = scmp.lt.s32.totalorder %s19, 1
      %s213 = scalar_select %p212, %s19, 1
      %p214 = scmp.lt.s32.totalorder %s211, 1
      %s215 = scalar_select %p214, %s211, 1
      %s216 = smul.addr %s213, 2
      %s217 = sadd.s32 %s215, %s216
      %s218 = smul.addr %s217, 4
      %s219 = scalar_lea.vmem %s0, %s218
      %s220 = smul.u32 2, %s20
      %p221 = scmp.lt.s32.totalorder %s19, 1
      %s222 = scalar_select %p221, %s19, 1
      %s223 = smul.addr %s222, 3
      %s224 = smul.addr %s223, 8
      %s225 = scalar_lea.vmem %s4, %s224
      %s227 = smul.u32 %s20, 16
      %s228 = scalar_lea.vmem %s3, %s227
      %v229 = vld [vmem:[%s228] sm:$0xff]
      %v230 = vld [vmem:[%s228 + $0x8] sm:$0xff]
      %p231 = scmp.eq.s32.totalorder %s20, 0
      // Predicated region
      $region37: #{tpu_custom_call.1} parent=35 // pred_check
        %p232 = pneg %p231
      $region38: #{tpu_custom_call.1} parent=35 // pred_check_branch
        %234 = sbr.rel (%p232) target = $region40
      $region39: #{tpu_custom_call.1} parent=35 // pred_region
        %v235 = vld [vmem:[%s2] sm:$0x1]
        %vm236 = vcmask 253952
        %237 = vst.msk [vmem:[%s225] sm:$0x1] %vm236, %v235
      $region40: #{tpu_custom_call.1} parent=35 // pred_fallthru
        _
      %v238 = vld [vmem:[%s219] sm:$0xf]
      %v239 = vld [vmem:[%s219 + $0x4] sm:$0xf]
      %v240 = vld [vmem:[%s1] sm:$0xf]
      %v241 = vld [vmem:[%s1 + $0x4] sm:$0xf]
      %v242 = vld [vmem:[%s1 + $0x8] sm:$0xf]
      %v243 = vld [vmem:[%s1 + $0xc] sm:$0xf]
      %v244 = vld [vmem:[%s1 + $0x10] sm:$0xf]
      %v245 = vld [vmem:[%s1 + $0x14] sm:$0xf]
      %v246 = vld [vmem:[%s1 + $0x18] sm:$0xf]
      %v247 = vld [vmem:[%s1 + $0x1c] sm:$0xf]
      %v250 = vunpack.c.l.b16 %v238
      %v251 = vunpack.c.l.b16 %v239
      %v252 = vpack.c.b16 %v251, %v250
      %v261 = vunpack.c.l.b16 %v240
      %v262 = vunpack.c.l.b16 %v241
      %v263 = vunpack.c.l.b16 %v242
      %v264 = vunpack.c.l.b16 %v243
      %v265 = vunpack.c.l.b16 %v244
      %v266 = vunpack.c.l.b16 %v245
      %v267 = vunpack.c.l.b16 %v246
      %v268 = vunpack.c.l.b16 %v247
      %v269 = vpack.c.b16 %v262, %v261
      %v270 = vpack.c.b16 %v264, %v263
      %v271 = vpack.c.b16 %v266, %v265
      %v272 = vpack.c.b16 %v268, %v267
      %vm277 = vcmask 523264
      %v279 = vsel %vm277, %v252, 0
      %281 = vmatprep.subr.bf16.mxu0 0
      %282 = vmatpush1.bf16.msra.mxu0 0
      %283 = vmatprep.subr.bf16.mxu0 0
      %284 = vmatpush1.bf16.msra.mxu0 0
      %285 = vmatprep.subr.bf16.mxu0 0
      %286 = vmatpush1.bf16.msra.mxu0 0
      %287 = vmatprep.subr.bf16.mxu0 0
      %288 = vmatpush1.bf16.msra.mxu0 0
      %289 = vmatprep.subr.bf16.mxu0 0
      %290 = vmatpush1.bf16.msra.mxu0 %v272
      %291 = vmatprep.subr.bf16.mxu0 0
      %292 = vmatpush1.bf16.msra.mxu0 %v271
      %293 = vmatprep.subr.bf16.mxu0 0
      %294 = vmatpush1.bf16.msra.mxu0 %v270
      %295 = vmatprep.subr.bf16.mxu0 0
      %296 = vmatpush1.bf16.msra.mxu0 %v269
      %297 = vmatprep.subr.bf16.mxu0 0
      %298 = vmatpush2.bf16.msra.mxu0 0
      %299 = vmatprep.subr.bf16.mxu0 0
      %300 = vmatpush2.bf16.msra.mxu0 0
      %301 = vmatprep.subr.bf16.mxu0 0
      %302 = vmatpush2.bf16.msra.mxu0 0
      %303 = vmatprep.subr.bf16.mxu0 0
      %304 = vmatpush2.bf16.msra.mxu0 0
      %305 = vmatprep.subr.bf16.mxu0 0
      %306 = vmatpush2.bf16.msra.mxu0 0
      %307 = vmatprep.subr.bf16.mxu0 0
      %308 = vmatpush2.bf16.msra.mxu0 0
      %309 = vmatprep.subr.bf16.mxu0 0
      %310 = vmatpush2.bf16.msra.mxu0 0
      %311 = vmatprep.subr.bf16.mxu0 0
      %312 = vmatpush2.bf16.msra.mxu0 0
      %313 = vmatprep.mubr.bf16.mxu0 0
      %314 = vmatmul.mubr.bf16.gmra.mxu0 %v279
      %v315 = vpop.f32.mrf.mxu0
      %v316 = vadd.f32 %v229, %v315
      %v317 = vpop.f32.mrf.mxu0
      %v318 = vpop.f32.mrf.mxu0
      %v319 = vadd.f32 %v230, %v318
      %v320 = vpop.f32.mrf.mxu0
      %321 = vdwg.mxu0
      %s322 = sadd.s32 %s227, 1
      %s323 = scalar_lea.vmem %s225, %s322
      %vm324 = vcmask 261120
      %325 = vst.msk [vmem:[%s323] sm:$0xff] %vm324, %v316
      %326 = vst.msk [vmem:[%s323 + $0x8] sm:$0xff] %vm324, %v319
      %p327 = scmp.lt.s32.totalorder %s19, 1
      %s328 = scalar_select %p327, %s19, 1
      %s329 = smul.addr %s328, 3
      %s330 = smul.addr %s329, 8
      %s331 = scalar_lea.vmem %s4, %s330
      // Predicated region
      $region41: #{tpu_custom_call.1} parent=35 // pred_check
        %p332 = pneg %p136
      $region42: #{tpu_custom_call.1} parent=35 // pred_check_branch
        %334 = sbr.rel (%p332) target = $region44
      $region43: #{tpu_custom_call.1} parent=35 // pred_region
        _
      $region44: #{tpu_custom_call.1} parent=35 // pred_fallthru
        _
    $region36: #{tpu_custom_call.1} parent=5 // pred_fallthru
      _
    %p335 = scmp.le.s32.totalorder 2, %s10
    // Predicated region
    $region45: #{tpu_custom_call.1} parent=5 // pred_check
      %p336 = pneg %p335
    $region46: #{tpu_custom_call.1} parent=5 // pred_check_branch
      %338 = sbr.rel (%p336) target = $region48
    $region47: #{tpu_custom_call.1} parent=5 // pred_region
      %s339 = ssub.s32 %s10, 2
      // Predicated region
      $region49: #{tpu_custom_call.1} parent=47 // pred_check
        %p340 = pneg %p142
      $region50: #{tpu_custom_call.1} parent=47 // pred_check_branch
        %342 = sbr.rel (%p340) target = $region52
      $region51: #{tpu_custom_call.1} parent=47 // pred_region
        %p343 = scmp.lt.s32.totalorder %s21, 1
        %s344 = scalar_select %p343, %s21, 1
        %s345 = smul.addr %s344, 3
        %s346 = smul.addr %s345, 8
        %s347 = scalar_lea.vmem %s4, %s346
      $region52: #{tpu_custom_call.1} parent=47 // pred_fallthru
        _
    $region48: #{tpu_custom_call.1} parent=5 // pred_fallthru
      _
  $region6: #{tpu_custom_call.1} parent=0 // loop_footer
    %s14 = sadd.s32 1, %s10
  $region7: #{tpu_custom_call.1} parent=0 // loop_footer_branch
    %9 = sbr.rel target = $region3
  $region8: #{tpu_custom_call.1} parent=0 // loop_exit
    _

</llo_original>
